<compile_context>
chip_gen: v7x
topology: tpu7x:2x2x1
jax: 0.10.0
libtpu: 0.0.40
codegen_flags: <defaults>
</compile_context>

<pallas_src>
import functools

import jax
import jax.numpy as jnp
from jax.experimental import pallas as pl
from jax.experimental.pallas import tpu as pltpu

_BLOCK_BYTES_CAP = 2 * 1024 * 1024     # per-block cap -> 4 pipeline bufs <= 8 MiB
_MEGACORE_MIN_BYTES = 1 * 1024 * 1024  # force >= 2 row blocks above this (v7x: 2 TCs)


def _round_up(v, m):
    return ((v + m - 1) // m) * m


def _bias_kernel(alpha_ref, beta_ref, x_ref, o_ref, *, low, high, n_cols, apply_all):
    # f32 scalars from SMEM, hoisted to the prologue.
    alpha = alpha_ref[0]
    beta = beta_ref[0]

    x = x_ref[...]
    y = (alpha * x.astype(jnp.float32) + beta).astype(o_ref.dtype)

    if apply_all:
        o_ref[...] = y
    else:
        # Static [low, high) band: one (1, n_cols) column mask broadcast over
        # rows.  Untouched columns pass through bit-exactly.
        col = jax.lax.broadcasted_iota(jnp.int32, (1, n_cols), 1)
        in_band = (col >= low) & (col < high)
        o_ref[...] = jnp.where(in_band, y, x)


def bias_layer(x, low_range, high_range, alpha, beta):
    """Pallas implementation of BiasLayer.forward.

    x:            (B, C) logits
    low_range:    int, inclusive start of the corrected class slice (static)
    high_range:   int, exclusive end of the corrected class slice (static)
    alpha, beta:  scalar parameters (float32 nn.Parameter of shape (1,))

    Returns a new (B, C) array; `x` is left untouched (matches x.clone()).
    """
    B, C = x.shape
    low = max(int(low_range), 0)
    high = min(int(high_range), C)
    if low >= high:
        # Nothing to correct; JAX arrays are immutable, so returning x is
        # equivalent to the PyTorch clone for any functional caller.
        return x

    apply_all = (low == 0) and (high == C)

    a = jnp.asarray(alpha, dtype=jnp.float32).reshape(1)
    b = jnp.asarray(beta, dtype=jnp.float32).reshape(1)

    itemsize = jnp.dtype(x.dtype).itemsize
    row_bytes = C * itemsize
    sub = 16 if itemsize <= 2 else 8          # sublane multiple for the dtype

    # --- row tiling (columns: one full-width lane-dense block) -------------
    if B <= sub:
        row_tile = B                           # full-dim block is always legal
    else:
        max_rows = max(sub, (_BLOCK_BYTES_CAP // row_bytes) // sub * sub)
        if B * row_bytes >= _MEGACORE_MIN_BYTES and B >= 2 * sub:
            # Keep >= 2 parallel row blocks so both v7x TensorCores get work.
            max_rows = min(max_rows, _round_up(pl.cdiv(B, 2), sub))
        if B <= max_rows:
            row_tile = B
        else:
            n_blocks = pl.cdiv(B, max_rows)
            row_tile = min(_round_up(pl.cdiv(B, n_blocks), sub), max_rows)
    n_row_blocks = pl.cdiv(B, row_tile)

    kernel = functools.partial(
        _bias_kernel, low=low, high=high, n_cols=C, apply_all=apply_all)

    block = (row_tile, C)
    idx = lambda i: (i, 0)
    x_spec_kwargs = {}
    if n_row_blocks >= 4:
        # Many small DMAs: a third pipeline buffer hides their latency.
        x_spec_kwargs["pipeline_mode"] = pl.Buffered(3)

    return pl.pallas_call(
        kernel,
        out_shape=jax.ShapeDtypeStruct((B, C), x.dtype),
        grid=(n_row_blocks,),
        in_specs=[
            pl.BlockSpec(memory_space=pltpu.MemorySpace.SMEM),   # alpha (f32)
            pl.BlockSpec(memory_space=pltpu.MemorySpace.SMEM),   # beta  (f32)
            pl.BlockSpec(block, idx, **x_spec_kwargs),           # x
        ],
        out_specs=pl.BlockSpec(block, idx),
        compiler_params=pltpu.CompilerParams(
            dimension_semantics=("parallel",)),
    )(a, b, x)


def _reference(x, low, high, alpha, beta):
    # Plain-JAX mirror of the PyTorch forward.
    return x.at[:, low:high].set(alpha[0] * x[:, low:high] + beta[0])


if __name__ == "__main__":
    key = jax.random.PRNGKey(0)
    alpha = jnp.array([1.5], dtype=jnp.float32)   # perturbed from torch.ones(1)
    beta = jnp.array([0.25], dtype=jnp.float32)   # perturbed from torch.zeros(1)

    # (name, B, C, low, high)
    cases = [
        ("typical", 16, 384, 130, 250),        # band straddles 128-lane tiles
        ("tail_edge", 8, 200, 100, 200),       # C not /128, high == C
        ("multi_block", 2048, 384, 128, 384),  # 2 parallel row blocks (v7x)
    ]

    keys = jax.random.split(key, len(cases))
    for (name, B, C, low, high), k in zip(cases, keys):
        x = jax.random.normal(k, (B, C), dtype=jnp.float32)
        out = jax.block_until_ready(bias_layer(x, low, high, alpha, beta))
        ref = jax.block_until_ready(_reference(x, low, high, alpha, beta))

        assert out.shape == x.shape and out.dtype == x.dtype, name
        assert jnp.allclose(out, ref, atol=1e-6), f"mismatch vs reference: {name}"
        # Untouched columns must be bit-exact copies of x (clone semantics).
        assert jnp.array_equal(out[:, :low], x[:, :low]), f"prefix clobbered: {name}"
        assert jnp.array_equal(out[:, high:], x[:, high:]), f"suffix clobbered: {name}"

    print("KERNEL_OK")
</pallas_src>

<mosaic_0001>
module attributes {stable_mosaic.version = 11 : i64} {
  func.func @_bias_kernel(%arg0: i32, %arg1: memref<1xf32, #tpu.memory_space<smem>>, %arg2: memref<1xf32, #tpu.memory_space<smem>>, %arg3: memref<16x384xf32, #tpu.memory_space<vmem>>, %arg4: memref<16x384xf32, #tpu.memory_space<vmem>>) attributes {dimension_semantics = [#tpu.dimension_semantics<parallel>], iteration_bounds = array<i64: 1>, scalar_prefetch = 0 : i64, scratch_operands = 0 : i64, tpu.core_type = #tpu.core_type<tc>, window_params = [{transform_indices = @transform_0, window_bounds = array<i64: 1>}, {transform_indices = @transform_1, window_bounds = array<i64: 1>}, {transform_indices = @transform_2, window_bounds = array<i64: 16, 384>}, {transform_indices = @transform_3, window_bounds = array<i64: 16, 384>}]} {
    %c0 = arith.constant 0 : index
    %0 = memref.load %arg1[%c0] : memref<1xf32, #tpu.memory_space<smem>>
    %c0_0 = arith.constant 0 : index
    %1 = memref.load %arg2[%c0_0] : memref<1xf32, #tpu.memory_space<smem>>
    %c0_1 = arith.constant 0 : index
    %c0_2 = arith.constant 0 : index
    %2 = vector.load %arg3[%c0_1, %c0_2] : memref<16x384xf32, #tpu.memory_space<vmem>>, vector<16x384xf32>
    %3 = vector.broadcast %0 : f32 to vector<16x384xf32>
    %4 = arith.mulf %3, %2 : vector<16x384xf32>
    %5 = vector.broadcast %1 : f32 to vector<16x384xf32>
    %6 = arith.addf %4, %5 : vector<16x384xf32>
    %7 = tpu.iota {dimensions = array<i32: 1>} : vector<1x384xi32>
    %c130_i32 = arith.constant 130 : i32
    %8 = vector.broadcast %c130_i32 : i32 to vector<1x384xi32>
    %9 = arith.cmpi sge, %7, %8 : vector<1x384xi32>
    %c250_i32 = arith.constant 250 : i32
    %10 = vector.broadcast %c250_i32 : i32 to vector<1x384xi32>
    %11 = arith.cmpi slt, %7, %10 : vector<1x384xi32>
    %12 = arith.andi %9, %11 : vector<1x384xi1>
    %13 = vector.shape_cast %12 : vector<1x384xi1> to vector<1x384xi1>
    %14 = vector.broadcast %13 : vector<1x384xi1> to vector<16x384xi1>
    %15 = arith.select %14, %6, %2 : vector<16x384xi1>, vector<16x384xf32>
    %c0_3 = arith.constant 0 : index
    %c0_4 = arith.constant 0 : index
    %16 = vector.load %arg4[%c0_3, %c0_4] : memref<16x384xf32, #tpu.memory_space<vmem>>, vector<16x384xf32>
    tpu.vector_store %arg4[%c0_3, %c0_4], %15 {strides = array<i32>} : memref<16x384xf32, #tpu.memory_space<vmem>>, vector<16x384xf32>,
    return
  }
  func.func @transform_0(%arg0: i32) -> i32 {
    %c0_i32 = arith.constant 0 : i32
    %c0_i32_0 = arith.constant 0 : i32
    return %c0_i32 : i32
  }
  func.func @transform_1(%arg0: i32) -> i32 {
    %c0_i32 = arith.constant 0 : i32
    %c0_i32_0 = arith.constant 0 : i32
    return %c0_i32 : i32
  }
  func.func @transform_2(%arg0: i32) -> (i32, i32) {
    %c0_i32 = arith.constant 0 : i32
    %c0_i32_0 = arith.constant 0 : i32
    return %arg0, %c0_i32 : i32, i32
  }
  func.func @transform_3(%arg0: i32) -> (i32, i32) {
    %c0_i32 = arith.constant 0 : i32
    %c0_i32_0 = arith.constant 0 : i32
    return %arg0, %c0_i32 : i32, i32
  }
}

</mosaic_0001>

<llo_original>
// kernel: tpu_custom_call.1
$region0: #{tpu_custom_call.1}
  #allocation0 [shape = 'u32[]', space=smem, size = 0x4, offset = 0x4, fixed_abs, tag = 'smem constant byte address 0x4 - core index']
  #allocation1 [shape = 'u32[144,128]{1,0:T(1,128)}', space=vmem, size = 0x12000, scoped, tag = 'internal scratch']
  #allocation2 [shape = 'f32[1]{0:T(128)S(6)}', space=smem, size = 0x200, scoped, tag = 'scoped memory for tpu_custom_call.1']
  #allocation3 [shape = 'f32[1]{0:T(128)S(6)}', space=smem, size = 0x200, scoped, tag = 'scoped memory for tpu_custom_call.1']
  %s0 = inlined_call_operand.<no memory space> [shape: f32[1], index: 0, kind: input, shape index: {}]
  %s1 = inlined_call_operand.<no memory space> [shape: f32[1], index: 1, kind: input, shape index: {}]
  %s2 = inlined_call_operand.hbm [shape: f32[16,384], index: 2, kind: input, shape index: {}]
  %s3 = inlined_call_operand.hbm [shape: f32[16,384], index: 3, kind: output, shape index: {}]
  %s4 = sld [smem:[#allocation0]]
  $region26: #{tpu_custom_call.1} parent=0
    _
  %s6 = ssub.s32 1, %s4
  %s7 = scalar_select 0, %s6, %s4
  %8 = sst [smem:[#allocation2]] %s0
  %9 = sst [smem:[#allocation3]] %s1
  $region1: #{tpu_custom_call.1} parent=0
    #allocation4 [shape = 'u8[24576]{0}', space=vmem, size = 0x6000, scoped, tag = 'input window, operand 2, single buffered']
    #allocation5 [shape = 's32[1]{0}', space=sflag, size = 0x4, scoped, tag = 'scoped memory for tpu_custom_call.1']
    #allocation6 [shape = 's32[1]{0}', space=sflag, size = 0x4, scoped, tag = 'scoped memory for tpu_custom_call.1']
    #allocation7 [shape = 'u8[24576]{0}', space=vmem, size = 0x6000, scoped, tag = 'output window, operand 0, single buffered']
    %10 = vsyncpa [#allocation5], 0
    %11 = vsyncpa [#allocation6], 0
    // Predicated region
    $region2: #{tpu_custom_call.1} parent=1 // pred_check
      _
    $region3: #{tpu_custom_call.1} parent=1 // pred_check_branch
      %13 = sbr.rel (0) target = $region5
    $region4: #{tpu_custom_call.1} parent=1 // pred_region
      _
    $region5: #{tpu_custom_call.1} parent=1 // pred_fallthru
      _
    // Predicated region
    $region6: #{tpu_custom_call.1} parent=1 // pred_check
      _
    $region7: #{tpu_custom_call.1} parent=1 // pred_check_branch
      %15 = sbr.rel (0) target = $region9
    $region8: #{tpu_custom_call.1} parent=1 // pred_region
      _
    $region9: #{tpu_custom_call.1} parent=1 // pred_fallthru
      _
    // Predicated region
    $region10: #{tpu_custom_call.1} parent=1 // pred_check
      _
    $region11: #{tpu_custom_call.1} parent=1 // pred_check_branch
      %17 = sbr.rel (0) target = $region13
    $region12: #{tpu_custom_call.1} parent=1 // pred_region
      %s19 = ssub.s32 768, 768
      %20 = vsyncadd [#allocation5], %s19
      %s21 = sshll.u32 [#allocation4], 4
      %s22 = int_to_ptr.vmem [resolvable:$true] %s21
      %27 = dma.hbm_to_vmem [thread:$0]  %s2, 768, %s22, [#allocation5], 384, 384, 24
    $region13: #{tpu_custom_call.1} parent=1 // pred_fallthru
      _
    // Predicated region
    $region14: #{tpu_custom_call.1} parent=1 // pred_check
      _
    $region15: #{tpu_custom_call.1} parent=1 // pred_check_branch
      %29 = sbr.rel (0) target = $region17
    $region16: #{tpu_custom_call.1} parent=1 // pred_region
      %30 = dma.done [#allocation5], 768
    $region17: #{tpu_custom_call.1} parent=1 // pred_fallthru
      _
    %s31 = sld [smem:[#allocation2]]
    %s32 = sld [smem:[#allocation3]]
    %v33 = vld [vmem:[#allocation4] sm:$0xff]
    %v34 = vld [vmem:[#allocation4 + $0x8] sm:$0xff]
    %v35 = vld [vmem:[#allocation4 + $0x10] sm:$0xff]
    %v36 = vld [vmem:[#allocation4 + $0x18] sm:$0xff]
    %v37 = vld [vmem:[#allocation4 + $0x20] sm:$0xff]
    %v38 = vld [vmem:[#allocation4 + $0x28] sm:$0xff]
    %v39 = vstv %s31
    %v40 = vmul.f32 %v39, %v33
    %v41 = vmul.f32 %v39, %v34
    %v42 = vmul.f32 %v39, %v35
    %v43 = vmul.f32 %v39, %v36
    %v44 = vmul.f32 %v39, %v37
    %v45 = vmul.f32 %v39, %v38
    %v46 = vstv %s32
    %v47 = vadd.f32 %v40, %v46
    %v48 = vadd.f32 %v41, %v46
    %v49 = vadd.f32 %v42, %v46
    %v50 = vadd.f32 %v43, %v46
    %v51 = vadd.f32 %v44, %v46
    %v52 = vadd.f32 %v45, %v46
    %v53 = vlaneseq
    %v54 = vand.u32 %v53, 127
    %v55 = vadd.s32 %v54, 128
    %v56 = vadd.s32 %v54, 256
    %vm57 = vcmp.ge.s32.totalorder %v54, 130
    %vm58 = vcmp.ge.s32.totalorder %v55, 130
    %vm59 = vcmp.ge.s32.totalorder %v56, 130
    %vm60 = vcmp.lt.s32.totalorder %v54, 250
    %vm61 = vcmp.lt.s32.totalorder %v55, 250
    %vm62 = vcmp.lt.s32.totalorder %v56, 250
    %vm63 = vmand %vm57, %vm60
    %vm64 = vmand %vm58, %vm61
    %vm65 = vmand %vm59, %vm62
    %v66 = vsel %vm63, 1, 0
    %v67 = vsel %vm64, 1, 0
    %v68 = vsel %vm65, 1, 0
    %vm69 = vcmp.eq.s32.totalorder %v66, 1
    %vm70 = vcmp.eq.s32.totalorder %v67, 1
    %vm71 = vcmp.eq.s32.totalorder %v68, 1
    %v72 = vsel %vm69, %v47, %v33
    %v73 = vsel %vm70, %v48, %v34
    %v74 = vsel %vm71, %v49, %v35
    %v75 = vsel %vm69, %v50, %v36
    %v76 = vsel %vm70, %v51, %v37
    %v77 = vsel %vm71, %v52, %v38
    %78 = vst [vmem:[#allocation7] sm:$0xff] %v72
    %79 = vst [vmem:[#allocation7 + $0x8] sm:$0xff] %v73
    %80 = vst [vmem:[#allocation7 + $0x10] sm:$0xff] %v74
    %81 = vst [vmem:[#allocation7 + $0x18] sm:$0xff] %v75
    %82 = vst [vmem:[#allocation7 + $0x20] sm:$0xff] %v76
    %83 = vst [vmem:[#allocation7 + $0x28] sm:$0xff] %v77
    // Predicated region
    $region18: #{tpu_custom_call.1} parent=1 // pred_check
      _
    $region19: #{tpu_custom_call.1} parent=1 // pred_check_branch
      %85 = sbr.rel (0) target = $region21
    $region20: #{tpu_custom_call.1} parent=1 // pred_region
      %s87 = ssub.s32 768, 768
      %88 = vsyncadd [#allocation6], %s87
      %s89 = sshll.u32 [#allocation7], 4
      %s90 = int_to_ptr.vmem [resolvable:$true] %s89
      %95 = dma.vmem_to_hbm [thread:$0]  %s90, 768, %s3, [#allocation6], 384, 384, 24
    $region21: #{tpu_custom_call.1} parent=1 // pred_fallthru
      _
    // Predicated region
    $region22: #{tpu_custom_call.1} parent=1 // pred_check
      _
    $region23: #{tpu_custom_call.1} parent=1 // pred_check_branch
      %97 = sbr.rel (0) target = $region25
    $region24: #{tpu_custom_call.1} parent=1 // pred_region
      %98 = dma.done [#allocation6], 768
    $region25: #{tpu_custom_call.1} parent=1 // pred_fallthru
      _
    %99 = vsyncpa [#allocation5], 1
    %100 = vsyncpa [#allocation6], 1

</llo_original>
